<compile_context>
chip_gen: v5e
topology: v5e:2x2
jax: 0.10.0
libtpu: 0.0.40
codegen_flags: <defaults>
</compile_context>

<pallas_src>
import functools

import jax
import jax.numpy as jnp
from jax.experimental import pallas as pl
from jax.experimental.pallas import tpu as pltpu


def _round_up(x, m):
    return ((x + m - 1) // m) * m


def _vmem_limit_bytes():
    """Generation-aware scoped-VMEM limit: half the physical VMEM, <= 64 MiB.

    v5e/v6e (128 MiB physical) -> 64 MiB, v7x (64 MiB physical) -> 32 MiB.
    Falls back to a conservative 32 MiB if the query is unavailable.
    """
    cap = 64 * 1024 * 1024
    try:
        info = pltpu.get_tpu_info()
        cap = int(getattr(info, "vmem_capacity_bytes", cap)) or cap
    except Exception:
        pass
    return min(cap // 2, 64 * 1024 * 1024)


def _pick_batch_tile(batch, num_classes, itemsize, budget_bytes, requested=None):
    """Rows per grid step.

    Multiple of the dtype's sublane packing (8 rows f32 / 16 rows bf16), and
    budgeted on the f32 *working set*: double-buffered input tiles plus ~4
    (TB, C) f32 temporaries the kernel materializes after the in-kernel upcast
    (upcast logit, z, exp(z), weighted product).  Budgeting raw input bytes
    only would double the real footprint on the bf16 streaming path.
    """
    row_align = 8 * max(1, 4 // itemsize)          # 8 for f32, 16 for bf16
    if requested is not None:
        tb = _round_up(requested, row_align)
    else:
        per_row_bytes = 2 * num_classes * itemsize + 4 * num_classes * 4
        tb = budget_bytes // max(1, per_row_bytes)
        tb = max(row_align, min(1024, (tb // row_align) * row_align))
    return min(tb, _round_up(batch, row_align))


def _bsl_kernel(logit_ref, freq_ref, target_ref, loss_ref, acc_ref, *,
                smoothing, num_classes, batch, tile_rows, tiles_per_split):
    # logit_ref: (TB, C) f32/bf16, freq_ref: (1, C) f32 (log class freq),
    # target_ref: (TB, 1) i32, loss_ref: (1, 8, 128) f32 per-split partial,
    # acc_ref: (TB, 1) f32 VMEM scratch carrying per-row partial losses.
    i = pl.program_id(1)                               # tile index within split
    logical_block = pl.program_id(0) * tiles_per_split + i

    @pl.when(i == 0)
    def _init():
        acc_ref[...] = jnp.zeros_like(acc_ref)

    # Upcast in-kernel so bf16 logits stream straight from HBM (half traffic).
    logit = logit_ref[...].astype(jnp.float32) + freq_ref[...].astype(jnp.float32)

    # Numerically stable log-softmax pieces (per row).
    m = jnp.max(logit, axis=-1, keepdims=True)                    # (TB, 1)
    z = logit - m                                                 # (TB, C)
    lse = jnp.log(jnp.sum(jnp.exp(z), axis=-1, keepdims=True))    # (TB, 1)

    tb, ncols = logit.shape
    # (1, C) iota; the compare against tgt (TB, 1) broadcasts, so no (TB, C)
    # int32 temporary is materialized.
    col = jax.lax.broadcasted_iota(jnp.int32, (1, ncols), 1)
    tgt = target_ref[...]                                         # (TB, 1) i32

    # Smoothed one-hot folded into ONE weighted cross-lane reduce:
    #   per_row = lse - sum_c w_c * z_c,  w_c = 1-s at the target, s/(C-1) else,
    # which equals sum_c -tvec_c * log_softmax_c because sum(tvec) == 1.
    off = smoothing / (num_classes - 1)
    w = jnp.where(col == tgt, jnp.float32(1.0 - smoothing), jnp.float32(off))
    per_row = lse - jnp.sum(w * z, axis=-1, keepdims=True)        # (TB, 1)

    # Mask rows past the true batch (partial last tile / clamped duplicate
    # tile).  Keep this a select: garbage rows may be NaN/Inf and must not
    # leak into the accumulator.
    row = jax.lax.broadcasted_iota(jnp.int32, (tb, 1), 0) + logical_block * tile_rows
    acc_ref[...] += jnp.where(row < batch, per_row, 0.0)

    # Single cross-sublane reduce + lane-dense output store, once per split.
    @pl.when(i == pl.num_programs(1) - 1)
    def _finalize():
        total = jnp.sum(acc_ref[...]) * jnp.float32(1.0 / batch)
        loss_ref[...] = jnp.full(loss_ref.shape, total, jnp.float32)


def balanced_softmax_loss(logit, target, log_class_freq, *, smoothing,
                          num_classes, tile_rows=None):
    """logit: (B, C) f32 or bf16, target: (B,) int, log_class_freq: (1, C)."""
    B, C = logit.shape
    itemsize = jnp.dtype(logit.dtype).itemsize
    vmem_limit = _vmem_limit_bytes()
    tb = _pick_batch_tile(B, C, itemsize, budget_bytes=vmem_limit // 2,
                          requested=tile_rows)

    total_tiles = pl.cdiv(B, tb)
    # Megacore sharding (v7x has 2 TensorCores/chip).  Each split owns a
    # private accumulator and output block, so "parallel" cannot race;
    # single-TC chips simply iterate the split axis.
    num_splits = 2 if total_tiles >= 2 else 1
    tiles_per_split = pl.cdiv(total_tiles, num_splits)

    target2d = target.reshape(B, 1).astype(jnp.int32)
    freq = log_class_freq.astype(jnp.float32).reshape(1, C)

    def tile_index_map(c, i):
        # Clamp so DMAs never walk past the last (possibly partial) block when
        # total_tiles is not a multiple of num_splits; the duplicated tile's
        # rows are masked to zero inside the kernel.
        return (jnp.minimum(c * tiles_per_split + i, total_tiles - 1), 0)

    kernel = functools.partial(
        _bsl_kernel,
        smoothing=float(smoothing),
        num_classes=num_classes,
        batch=B,
        tile_rows=tb,
        tiles_per_split=tiles_per_split,
    )

    cost = pl.CostEstimate(
        flops=6 * B * C,
        transcendentals=B * C,
        bytes_accessed=B * C * itemsize + B * 4 + C * 4 + num_splits * 8 * 128 * 4,
    )

    partials = pl.pallas_call(
        kernel,
        out_shape=jax.ShapeDtypeStruct((num_splits, 8, 128), jnp.float32),
        grid=(num_splits, tiles_per_split),
        in_specs=[
            # Logits: pipelined (double-buffered) batch tiles.
            # TODO(synk): for very large C (>= ~64k) add an inner grid axis
            # over C with an online logsumexp instead of shrinking tile_rows.
            pl.BlockSpec((tb, C), tile_index_map),
            pl.BlockSpec((1, C), lambda c, i: (0, 0)),   # log class freq: resident
            pl.BlockSpec((tb, 1), tile_index_map),       # targets (lane compare)
        ],
        # Lane-dense per-split partial; the splits are summed in the wrapper.
        out_specs=pl.BlockSpec((1, 8, 128), lambda c, i: (c, 0, 0)),
        scratch_shapes=[pltpu.VMEM((tb, 1), jnp.float32)],
        compiler_params=pltpu.CompilerParams(
            # Split axis shards across TensorCores; the batch-tile axis carries
            # the per-split accumulator, hence "arbitrary".
            dimension_semantics=("parallel", "arbitrary"),
            vmem_limit_bytes=vmem_limit,
        ),
        cost_estimate=cost,
    )(logit, freq, target2d)
    return jnp.sum(partials[:, 0, 0])


def make_log_class_freq(all_train_label, num_classes, sample_weight=None):
    """Replicates the __init__ buffer: log(freq_per_class + 1e-6), shape (1, C)."""
    labels = jnp.asarray(all_train_label)
    onehot = (labels[:, None] == jnp.arange(num_classes)[None, :]).astype(jnp.float32)
    if sample_weight is None:
        freq = jnp.sum(onehot, axis=0)
    else:
        freq = jnp.sum(onehot * jnp.asarray(sample_weight)[:, None], axis=0)
    return jnp.log(freq + 1e-6)[None, :]                 # (1, C)


def _reference_loss(logit, target, log_class_freq, smoothing, num_classes):
    """Pure-JAX reference mirroring the PyTorch forward."""
    logit = logit + log_class_freq
    tvec = jnp.full(logit.shape, smoothing / (num_classes - 1), jnp.float32)
    tvec = tvec.at[jnp.arange(logit.shape[0]), target].set(1.0 - smoothing)
    llh = jax.nn.log_softmax(logit, axis=-1)
    return jnp.mean(jnp.sum(-tvec * llh, axis=-1))


if __name__ == "__main__":
    key = jax.random.PRNGKey(0)
    smoothing = 0.1

    # Case 1: f32, forced small tile -> 2 batch tiles -> 2-way split grid,
    # masked partial last tile, C not a multiple of 128.
    B, C, N_TRAIN = 12, 16, 64
    k1, k2, k3 = jax.random.split(key, 3)
    all_train_label = jax.random.randint(k1, (N_TRAIN,), 0, C)
    logit = jax.random.normal(k2, (B, C), dtype=jnp.float32)
    target = jax.random.randint(k3, (B,), 0, C)
    log_class_freq = make_log_class_freq(all_train_label, C)

    loss = balanced_softmax_loss(logit, target, log_class_freq,
                                 smoothing=smoothing, num_classes=C,
                                 tile_rows=8)
    loss = jax.block_until_ready(loss)
    ref = _reference_loss(logit, target, log_class_freq, smoothing, C)
    assert jnp.allclose(loss, ref, atol=1e-5, rtol=1e-5), (loss, ref)

    # Case 2: bf16 streaming path (upcast happens inside the kernel),
    # single-tile / single-split grid.
    logit_bf16 = logit.astype(jnp.bfloat16)
    loss_bf16 = balanced_softmax_loss(logit_bf16, target, log_class_freq,
                                      smoothing=smoothing, num_classes=C)
    loss_bf16 = jax.block_until_ready(loss_bf16)
    ref_bf16 = _reference_loss(logit_bf16.astype(jnp.float32), target,
                               log_class_freq, smoothing, C)
    assert jnp.allclose(loss_bf16, ref_bf16, atol=1e-5, rtol=1e-5), (loss_bf16, ref_bf16)

    # Case 3: odd tile count (7 tiles over 2 splits -> clamped duplicate tile),
    # smoothing=0, another C not a multiple of 128.
    B2, C2 = 50, 24
    k4, k5, k6 = jax.random.split(jax.random.PRNGKey(1), 3)
    all_train_label2 = jax.random.randint(k4, (96,), 0, C2)
    logit2 = jax.random.normal(k5, (B2, C2), dtype=jnp.float32)
    target2 = jax.random.randint(k6, (B2,), 0, C2)
    log_class_freq2 = make_log_class_freq(all_train_label2, C2)
    loss2 = balanced_softmax_loss(logit2, target2, log_class_freq2,
                                  smoothing=0.0, num_classes=C2, tile_rows=8)
    loss2 = jax.block_until_ready(loss2)
    ref2 = _reference_loss(logit2, target2, log_class_freq2, 0.0, C2)
    assert jnp.allclose(loss2, ref2, atol=1e-5, rtol=1e-5), (loss2, ref2)

    print("KERNEL_OK")
</pallas_src>

<mosaic_0001>
module attributes {stable_mosaic.version = 11 : i64} {
  func.func @_bsl_kernel(%arg0: i32, %arg1: i32, %arg2: memref<8x16xf32, #tpu.memory_space<vmem>>, %arg3: memref<1x16xf32, #tpu.memory_space<vmem>>, %arg4: memref<8x1xi32, #tpu.memory_space<vmem>>, %arg5: memref<1x8x128xf32, #tpu.memory_space<vmem>>, %arg6: memref<8x1xf32, #tpu.memory_space<vmem>>) attributes {dimension_semantics = [#tpu.dimension_semantics<parallel>, #tpu.dimension_semantics<arbitrary>], iteration_bounds = array<i64: 2, 1>, scalar_prefetch = 0 : i64, scratch_operands = 1 : i64, tpu.core_type = #tpu.core_type<tc>, window_params = [{transform_indices = @transform_0, window_bounds = array<i64: 8, 16>}, {pipeline_mode = #tpu.pipeline_mode<synchronous>, transform_indices = @transform_1, window_bounds = array<i64: 1, 16>}, {transform_indices = @transform_2, window_bounds = array<i64: 8, 1>}, {transform_indices = @transform_3, window_bounds = array<i64: 1, 8, 128>}]} {
    %c1_i32 = arith.constant 1 : i32
    %0 = arith.muli %arg0, %c1_i32 : i32
    %1 = arith.addi %0, %arg1 : i32
    %c0_i32 = arith.constant 0 : i32
    %2 = arith.cmpi eq, %arg1, %c0_i32 : i32
    %3 = arith.extui %2 : i1 to i32
    %c0_i32_0 = arith.constant 0 : i32
    %4 = arith.cmpi ne, %3, %c0_i32_0 : i32
    scf.if %4 {
      %cst_17 = arith.constant 0.000000e+00 : f32
      %43 = vector.broadcast %cst_17 : f32 to vector<8x1xf32>
      %c0_18 = arith.constant 0 : index
      %c0_19 = arith.constant 0 : index
      %44 = vector.load %arg6[%c0_18, %c0_19] : memref<8x1xf32, #tpu.memory_space<vmem>>, vector<8x1xf32>
      tpu.vector_store %arg6[%c0_18, %c0_19], %43 {strides = array<i32>} : memref<8x1xf32, #tpu.memory_space<vmem>>, vector<8x1xf32>,
    } else {
    }
    %c0 = arith.constant 0 : index
    %c0_1 = arith.constant 0 : index
    %5 = vector.load %arg2[%c0, %c0_1] : memref<8x16xf32, #tpu.memory_space<vmem>>, vector<8x16xf32>
    %c0_2 = arith.constant 0 : index
    %c0_3 = arith.constant 0 : index
    %6 = vector.load %arg3[%c0_2, %c0_3] : memref<1x16xf32, #tpu.memory_space<vmem>>, vector<1x16xf32>
    %7 = vector.broadcast %6 : vector<1x16xf32> to vector<8x16xf32>
    %8 = arith.addf %5, %7 : vector<8x16xf32>
    %cst = arith.constant dense<0xFF800000> : vector<8xf32>
    %9 = vector.multi_reduction <maximumf>, %8, %cst [1] : vector<8x16xf32> to vector<8xf32>
    %10 = vector.shape_cast %9 : vector<8xf32> to vector<8x1xf32>
    %11 = vector.broadcast %10 : vector<8x1xf32> to vector<8x16xf32>
    %12 = arith.subf %8, %11 : vector<8x16xf32>
    %13 = math.exp %12 : vector<8x16xf32>
    %cst_4 = arith.constant dense<0.000000e+00> : vector<8xf32>
    %14 = vector.multi_reduction <add>, %13, %cst_4 [1] : vector<8x16xf32> to vector<8xf32>
    %15 = vector.shape_cast %14 : vector<8xf32> to vector<8x1xf32>
    %16 = math.log %15 : vector<8x1xf32>
    %17 = tpu.iota {dimensions = array<i32: 1>} : vector<1x16xi32>
    %c0_5 = arith.constant 0 : index
    %c0_6 = arith.constant 0 : index
    %18 = vector.load %arg4[%c0_5, %c0_6] : memref<8x1xi32, #tpu.memory_space<vmem>>, vector<8x1xi32>
    %19 = vector.broadcast %17 : vector<1x16xi32> to vector<8x16xi32>
    %20 = vector.broadcast %18 : vector<8x1xi32> to vector<8x16xi32>
    %21 = arith.cmpi eq, %19, %20 : vector<8x16xi32>
    %cst_7 = arith.constant 0.899999976 : f32
    %cst_8 = arith.constant 0.00666666683 : f32
    %22 = vector.broadcast %cst_7 : f32 to vector<8x16xf32>
    %23 = vector.broadcast %cst_8 : f32 to vector<8x16xf32>
    %24 = arith.select %21, %22, %23 : vector<8x16xi1>, vector<8x16xf32>
    %25 = arith.mulf %24, %12 : vector<8x16xf32>
    %cst_9 = arith.constant dense<0.000000e+00> : vector<8xf32>
    %26 = vector.multi_reduction <add>, %25, %cst_9 [1] : vector<8x16xf32> to vector<8xf32>
    %27 = vector.shape_cast %26 : vector<8xf32> to vector<8x1xf32>
    %28 = arith.subf %16, %27 : vector<8x1xf32>
    %29 = tpu.iota {dimensions = array<i32: 0>} : vector<8x1xi32>
    %c8_i32 = arith.constant 8 : i32
    %30 = arith.muli %1, %c8_i32 : i32
    %31 = vector.broadcast %30 : i32 to vector<8x1xi32>
    %32 = arith.addi %29, %31 : vector<8x1xi32>
    %c0_10 = arith.constant 0 : index
    %c0_11 = arith.constant 0 : index
    %33 = vector.load %arg6[%c0_10, %c0_11] : memref<8x1xf32, #tpu.memory_space<vmem>>, vector<8x1xf32>
    %c12_i32 = arith.constant 12 : i32
    %34 = vector.broadcast %c12_i32 : i32 to vector<8x1xi32>
    %35 = arith.cmpi slt, %32, %34 : vector<8x1xi32>
    %cst_12 = arith.constant 0.000000e+00 : f32
    %36 = vector.broadcast %cst_12 : f32 to vector<8x1xf32>
    %37 = arith.select %35, %28, %36 : vector<8x1xi1>, vector<8x1xf32>
    %38 = arith.addf %33, %37 : vector<8x1xf32>
    %c0_13 = arith.constant 0 : index
    %c0_14 = arith.constant 0 : index
    %39 = vector.load %arg6[%c0_13, %c0_14] : memref<8x1xf32, #tpu.memory_space<vmem>>, vector<8x1xf32>
    tpu.vector_store %arg6[%c0_13, %c0_14], %38 {strides = array<i32>} : memref<8x1xf32, #tpu.memory_space<vmem>>, vector<8x1xf32>,
    %c0_i32_15 = arith.constant 0 : i32
    %40 = arith.cmpi eq, %arg1, %c0_i32_15 : i32
    %41 = arith.extui %40 : i1 to i32
    %c0_i32_16 = arith.constant 0 : i32
    %42 = arith.cmpi ne, %41, %c0_i32_16 : i32
    scf.if %42 {
      %c0_17 = arith.constant 0 : index
      %c0_18 = arith.constant 0 : index
      %43 = vector.load %arg6[%c0_17, %c0_18] : memref<8x1xf32, #tpu.memory_space<vmem>>, vector<8x1xf32>
      %44 = vector.shape_cast %43 : vector<8x1xf32> to vector<1x8x1xf32>
      %cst_19 = arith.constant dense<0.000000e+00> : vector<1xf32>
      %45 = vector.multi_reduction <add>, %44, %cst_19 [1, 2] : vector<1x8x1xf32> to vector<1xf32>
      %46 = vector.shape_cast %45 : vector<1xf32> to vector<1x1x1xf32>
      %47 = vector.extract %46[0, 0, 0] : f32 from vector<1x1x1xf32>
      %cst_20 = arith.constant 0.0833333358 : f32
      %48 = arith.mulf %47, %cst_20 : f32
      %49 = vector.broadcast %48 : f32 to vector<1x8x128xf32>
      %c0_21 = arith.constant 0 : index
      %c0_22 = arith.constant 0 : index
      %c0_23 = arith.constant 0 : index
      %50 = vector.load %arg5[%c0_21, %c0_22, %c0_23] : memref<1x8x128xf32, #tpu.memory_space<vmem>>, vector<1x8x128xf32>
      tpu.vector_store %arg5[%c0_21, %c0_22, %c0_23], %49 {strides = array<i32>} : memref<1x8x128xf32, #tpu.memory_space<vmem>>, vector<1x8x128xf32>,
    } else {
    }
    return
  }
  func.func @transform_0(%arg0: i32, %arg1: i32) -> (i32, i32) {
    %c1_i32 = arith.constant 1 : i32
    %0 = arith.muli %arg0, %c1_i32 : i32
    %1 = arith.addi %0, %arg1 : i32
    %c1_i32_0 = arith.constant 1 : i32
    %2 = arith.minsi %1, %c1_i32_0 : i32
    %c0_i32 = arith.constant 0 : i32
    %c0_i32_1 = arith.constant 0 : i32
    return %2, %c0_i32 : i32, i32
  }
  func.func @transform_1(%arg0: i32, %arg1: i32) -> (i32, i32) {
    %c0_i32 = arith.constant 0 : i32
    %c0_i32_0 = arith.constant 0 : i32
    %c0_i32_1 = arith.constant 0 : i32
    return %c0_i32, %c0_i32_0 : i32, i32
  }
  func.func @transform_2(%arg0: i32, %arg1: i32) -> (i32, i32) {
    %c1_i32 = arith.constant 1 : i32
    %0 = arith.muli %arg0, %c1_i32 : i32
    %1 = arith.addi %0, %arg1 : i32
    %c1_i32_0 = arith.constant 1 : i32
    %2 = arith.minsi %1, %c1_i32_0 : i32
    %c0_i32 = arith.constant 0 : i32
    %c0_i32_1 = arith.constant 0 : i32
    return %2, %c0_i32 : i32, i32
  }
  func.func @transform_3(%arg0: i32, %arg1: i32) -> (i32, i32, i32) {
    %c0_i32 = arith.constant 0 : i32
    %c0_i32_0 = arith.constant 0 : i32
    %c0_i32_1 = arith.constant 0 : i32
    return %arg0, %c0_i32, %c0_i32_0 : i32, i32, i32
  }
}

</mosaic_0001>

<llo_original>
// kernel: tpu_custom_call.1
$region0: #{tpu_custom_call.1}
  #allocation0 [shape = 'u32[]', space=smem, size = 0x4, offset = 0x4, fixed_abs, tag = 'smem constant byte address 0x4 - core index']
  #allocation1 [shape = 'u32[72,128]{1,0:T(1,128)}', space=vmem, size = 0x9000, scoped, tag = 'internal scratch']
  #allocation2 [shape = 'f32[8,1]{1,0:T(8,128)}', space=vmem, size = 0x1000, scoped, tag = 'scratch operand']
  %s0 = inlined_call_operand.vmem [shape: f32[12,16], index: 0, kind: input, shape index: {}]
  %s1 = inlined_call_operand.vmem [shape: f32[1,16], index: 1, kind: input, shape index: {}]
  %s2 = inlined_call_operand.vmem [shape: s32[12,1], index: 2, kind: input, shape index: {}]
  %s3 = inlined_call_operand.hbm [shape: f32[2,8,128], index: 3, kind: output, shape index: {}]
  %s4 = sld [smem:[#allocation0]]
  $region53: #{tpu_custom_call.1} parent=0
    _
  %s6 = ssub.s32 1, %s4
  %s7 = scalar_select 0, %s6, %s4
  $region1: #{tpu_custom_call.1} parent=0
    #allocation3 [shape = 'u8[8192]{0}', space=vmem, size = 0x2000, scoped, tag = 'output window, operand 0']
    #allocation4 [shape = 's32[2]{0}', space=sflag, size = 0x8, scoped, tag = 'scoped memory for tpu_custom_call.1']
    %8 = vsyncpa [#allocation4], 0
    %s9 = scalar_lea.sflag [#allocation4], 1
    %10 = vsyncpa %s9, 0
    loop: start=0, step=1, limit=4
    $region2: #{tpu_custom_call.1} parent=1 // loop_pre_header
      _
    $region3: #{tpu_custom_call.1} parent=1 // loop_header
      %s12 = sphi 0, %s16
      %p13 = scmp.ge.s32.totalorder %s12, 4
      %s19 = sphi 0, %s31
      %s20 = sphi 0, %s27
      %s21 = sphi 0, %s19
      %s22 = sphi 0, %s20
      %s23 = sphi 0, %s21
      %s24 = sphi 0, %s22
      %s40 = sphi 0, %s42
      %s43 = sphi 0, %s40
      %s44 = sphi 0, %s43
      %s60 = sphi 0, %s44
      %s64 = sphi 0, %s64
      %s66 = sphi 0, %s64
      %s67 = sphi 0, %s66
      %s81 = sphi 0, %s67
      %s93 = sphi 0, %s95
      %s96 = sphi 0, %s93
      %s97 = sphi 0, %s96
      %s113 = sphi 0, %s97
      %s119 = sphi 0, %s121
      %s122 = sphi 0, %s119
      %s123 = sphi 0, %s122
      %s139 = sphi 0, %s123
    $region4: #{tpu_custom_call.1} parent=1 // loop_header_branch
      %15 = sbr.rel (%p13) target = $region8
    $region5: #{tpu_custom_call.1} parent=1 // loop_body
      %s17 = ssub.s32 %s12, 1
      %s18 = ssub.s32 %s12, 2
      %s25 = sadd.s32 1, %s20
      %p26 = scmp.ge.s32.totalorder %s25, 1
      %s27 = scalar_select %p26, 0, %s25
      %s28 = sadd.s32 1, %s19
      %s29 = scalar_select %p26, %s28, %s19
      %p30 = scmp.ge.s32.totalorder %s29, 2
      %s31 = scalar_select %p30, 0, %s29
      %s32 = sadd.s32 %s19, %s20
      %p33 = scmp.lt.s32.totalorder %s32, 1
      %s34 = scalar_select %p33, %s32, 1
      %s35 = sadd.s32 %s31, %s27
      %p36 = scmp.lt.s32.totalorder %s35, 1
      %s37 = scalar_select %p36, %s35, 1
      %s38 = ssub.s32 %s34, %s37
      %p39 = scmp.eq.s32.totalorder %s38, 0
      %s41 = sadd.s32 %s40, 1
      %s42 = scalar_select %p39, %s40, %s41
      %p45 = pneg %p39
      %p46 = scmp.eq.s32.totalorder %s12, 1
      %p47 = por %p45, %p46
      %p48 = scmp.ne.s32.totalorder %s40, %s43
      %p49 = scmp.eq.s32.totalorder %s12, 0
      %p50 = por %p48, %p49
      %p51 = scmp.ne.s32.totalorder %s40, %s43
      %p52 = scmp.eq.s32.totalorder %s17, 1
      %p53 = por %p51, %p52
      %p54 = scmp.ne.s32.totalorder %s43, %s44
      %p55 = scmp.eq.s32.totalorder %s17, 0
      %p56 = por %p54, %p55
      %p57 = scmp.ne.s32.totalorder %s43, %s44
      %p58 = scmp.eq.s32.totalorder %s18, 1
      %p59 = por %p57, %p58
      %p61 = scmp.ne.s32.totalorder %s44, %s60
      %p62 = scmp.eq.s32.totalorder %s18, 0
      %p63 = por %p61, %p62
      %s65 = sadd.s32 %s64, 1
      %p68 = scmp.eq.s32.totalorder %s12, 1
      %p69 = scmp.ne.s32.totalorder %s64, %s66
      %p70 = scmp.eq.s32.totalorder %s12, 0
      %p71 = por %p69, %p70
      %p72 = scmp.ne.s32.totalorder %s64, %s66
      %p73 = scmp.eq.s32.totalorder %s17, 1
      %p74 = por %p72, %p73
      %p75 = scmp.ne.s32.totalorder %s66, %s67
      %p76 = scmp.eq.s32.totalorder %s17, 0
      %p77 = por %p75, %p76
      %p78 = scmp.ne.s32.totalorder %s66, %s67
      %p79 = scmp.eq.s32.totalorder %s18, 1
      %p80 = por %p78, %p79
      %p82 = scmp.ne.s32.totalorder %s67, %s81
      %p83 = scmp.eq.s32.totalorder %s18, 0
      %p84 = por %p82, %p83
      %s85 = sadd.s32 %s19, %s20
      %p86 = scmp.lt.s32.totalorder %s85, 1
      %s87 = scalar_select %p86, %s85, 1
      %s88 = sadd.s32 %s31, %s27
      %p89 = scmp.lt.s32.totalorder %s88, 1
      %s90 = scalar_select %p89, %s88, 1
      %s91 = ssub.s32 %s87, %s90
      %p92 = scmp.eq.s32.totalorder %s91, 0
      %s94 = sadd.s32 %s93, 1
      %s95 = scalar_select %p92, %s93, %s94
      %p98 = pneg %p92
      %p99 = scmp.eq.s32.totalorder %s12, 1
      %p100 = por %p98, %p99
      %p101 = scmp.ne.s32.totalorder %s93, %s96
      %p102 = scmp.eq.s32.totalorder %s12, 0
      %p103 = por %p101, %p102
      %p104 = scmp.ne.s32.totalorder %s93, %s96
      %p105 = scmp.eq.s32.totalorder %s17, 1
      %p106 = por %p104, %p105
      %p107 = scmp.ne.s32.totalorder %s96, %s97
      %p108 = scmp.eq.s32.totalorder %s17, 0
      %p109 = por %p107, %p108
      %p110 = scmp.ne.s32.totalorder %s96, %s97
      %p111 = scmp.eq.s32.totalorder %s18, 1
      %p112 = por %p110, %p111
      %p114 = scmp.ne.s32.totalorder %s97, %s113
      %p115 = scmp.eq.s32.totalorder %s18, 0
      %p116 = por %p114, %p115
      %s117 = ssub.s32 %s19, %s31
      %p118 = scmp.eq.s32.totalorder %s117, 0
      %s120 = sadd.s32 %s119, 1
      %s121 = scalar_select %p118, %s119, %s120
      %p124 = pneg %p118
      %p125 = scmp.eq.s32.totalorder %s12, 1
      %p126 = por %p124, %p125
      %p127 = scmp.ne.s32.totalorder %s119, %s122
      %p128 = scmp.eq.s32.totalorder %s12, 0
      %p129 = por %p127, %p128
      %p130 = scmp.ne.s32.totalorder %s119, %s122
      %p131 = scmp.eq.s32.totalorder %s17, 1
      %p132 = por %p130, %p131
      %p133 = scmp.ne.s32.totalorder %s122, %s123
      %p134 = scmp.eq.s32.totalorder %s17, 0
      %p135 = por %p133, %p134
      %p136 = scmp.ne.s32.totalorder %s122, %s123
      %p137 = scmp.eq.s32.totalorder %s18, 1
      %p138 = por %p136, %p137
      %p140 = scmp.ne.s32.totalorder %s123, %s139
      %p141 = scmp.eq.s32.totalorder %s18, 0
      %p142 = por %p140, %p141
      %p143 = scmp.le.s32.totalorder 1, %s12
      %p144 = scmp.lt.s32.totalorder %s12, 3
      %p145 = pnand %p143, %p144
      %p146 = pneg %p145
      // Predicated region
      $region9: #{tpu_custom_call.1} parent=5 // pred_check
        _
      $region10: #{tpu_custom_call.1} parent=5 // pred_check_branch
        %148 = sbr.rel (%p145) target = $region12
      $region11: #{tpu_custom_call.1} parent=5 // pred_region
        %s149 = ssub.s32 %s12, 1
        // Predicated region
        $region13: #{tpu_custom_call.1} parent=11 // pred_check
          %p150 = pneg %p77
        $region14: #{tpu_custom_call.1} parent=11 // pred_check_branch
          %152 = sbr.rel (%p150) target = $region16
        $region15: #{tpu_custom_call.1} parent=11 // pred_region
          _
        $region16: #{tpu_custom_call.1} parent=11 // pred_fallthru
          _
      $region12: #{tpu_custom_call.1} parent=5 // pred_fallthru
        _
      %p153 = scmp.lt.s32.totalorder %s12, 2
      // Predicated region
      $region17: #{tpu_custom_call.1} parent=5 // pred_check
        %p154 = pneg %p153
      $region18: #{tpu_custom_call.1} parent=5 // pred_check_branch
        %156 = sbr.rel (%p154) target = $region20
      $region19: #{tpu_custom_call.1} parent=5 // pred_region
        // Predicated region
        $region21: #{tpu_custom_call.1} parent=19 // pred_check
          %p157 = pneg %p50
        $region22: #{tpu_custom_call.1} parent=19 // pred_check_branch
          %159 = sbr.rel (%p157) target = $region24
        $region23: #{tpu_custom_call.1} parent=19 // pred_region
          %s160 = sadd.s32 %s19, %s20
          %p161 = scmp.lt.s32.totalorder %s160, 1
          %s162 = scalar_select %p161, %s160, 1
          %p163 = scmp.lt.s32.totalorder %s162, 1
          %s164 = scalar_select %p163, %s162, 1
          %s165 = smul.addr %s164, 8
          %s166 = scalar_lea.vmem %s0, %s165
          %s167 = sadd.s32 %s19, %s20
          %p168 = scmp.lt.s32.totalorder %s167, 1
          %s169 = scalar_select %p168, %s167, 1
        $region24: #{tpu_custom_call.1} parent=19 // pred_fallthru
          _
        // Predicated region
        $region25: #{tpu_custom_call.1} parent=19 // pred_check
          %p170 = pneg %p103
        $region26: #{tpu_custom_call.1} parent=19 // pred_check_branch
          %172 = sbr.rel (%p170) target = $region28
        $region27: #{tpu_custom_call.1} parent=19 // pred_region
          %s173 = sadd.s32 %s19, %s20
          %p174 = scmp.lt.s32.totalorder %s173, 1
          %s175 = scalar_select %p174, %s173, 1
          %p176 = scmp.lt.s32.totalorder %s175, 1
          %s177 = scalar_select %p176, %s175, 1
          %s178 = smul.addr %s177, 8
          %s179 = scalar_lea.vmem %s2, %s178
          %s180 = sadd.s32 %s19, %s20
          %p181 = scmp.lt.s32.totalorder %s180, 1
          %s182 = scalar_select %p181, %s180, 1
        $region28: #{tpu_custom_call.1} parent=19 // pred_fallthru
          _
      $region20: #{tpu_custom_call.1} parent=5 // pred_fallthru
        _
      %p183 = scmp.le.s32.totalorder 1, %s12
      %p184 = scmp.lt.s32.totalorder %s12, 3
      %p185 = pnand %p183, %p184
      %p186 = pneg %p185
      // Predicated region
      $region29: #{tpu_custom_call.1} parent=5 // pred_check
        _
      $region30: #{tpu_custom_call.1} parent=5 // pred_check_branch
        %188 = sbr.rel (%p185) target = $region32
      $region31: #{tpu_custom_call.1} parent=5 // pred_region
        %s189 = ssub.s32 %s12, 1
        %s190 = sadd.s32 %s21, %s22
        %p191 = scmp.lt.s32.totalorder %s190, 1
        %s192 = scalar_select %p191, %s190, 1
        %p193 = scmp.lt.s32.totalorder %s192, 1
        %s194 = scalar_select %p193, %s192, 1
        %s195 = smul.addr %s194, 8
        %s196 = scalar_lea.vmem %s0, %s195
        %p197 = pneg %p56
        %p198 = pneg %p53
        %p199 = pneg %p77
        %p200 = pneg %p74
        %s201 = sadd.s32 %s21, %s22
        %p202 = scmp.lt.s32.totalorder %s201, 1
        %s203 = scalar_select %p202, %s201, 1
        %p204 = scmp.lt.s32.totalorder %s203, 1
        %s205 = scalar_select %p204, %s203, 1
        %s206 = smul.addr %s205, 8
        %s207 = scalar_lea.vmem %s2, %s206
        %p208 = pneg %p109
        %p209 = pneg %p106
        %p210 = pneg %p135
        %p211 = pneg %p132
        %s212 = sand.u32 %s122, 1
        %s213 = scalar_lea.sflag [#allocation4], %s212
        %s214 = sand.u32 %s122, 1
        %s215 = smul.addr %s214, 8
        %s216 = scalar_lea.vmem [#allocation3], %s215
        %s217 = sadd.s32 %s21, %s22
        %p218 = scmp.lt.s32.totalorder %s217, 1
        %s219 = scalar_select %p218, %s217, 1
        %p220 = scmp.lt.s32.totalorder %s219, 1
        %s221 = scalar_select %p220, %s219, 1
        %s222 = smul.addr %s221, 8
        %s223 = scalar_lea.vmem %s0, %s222
        %s224 = sadd.s32 %s21, %s22
        %p225 = scmp.lt.s32.totalorder %s224, 1
        %s226 = scalar_select %p225, %s224, 1
        %s227 = sadd.s32 %s21, %s22
        %p228 = scmp.lt.s32.totalorder %s227, 1
        %s229 = scalar_select %p228, %s227, 1
        %p230 = scmp.lt.s32.totalorder %s229, 1
        %s231 = scalar_select %p230, %s229, 1
        %s232 = smul.addr %s231, 8
        %s233 = scalar_lea.vmem %s2, %s232
        %s234 = sadd.s32 %s21, %s22
        %p235 = scmp.lt.s32.totalorder %s234, 1
        %s236 = scalar_select %p235, %s234, 1
        %s237 = sadd.s32 %s21, %s22
        %p238 = scmp.eq.s32.totalorder %s22, 0
        // Predicated region
        $region33: #{tpu_custom_call.1} parent=31 // pred_check
          %p239 = pneg %p238
        $region34: #{tpu_custom_call.1} parent=31 // pred_check_branch
          %241 = sbr.rel (%p239) target = $region36
        $region35: #{tpu_custom_call.1} parent=31 // pred_region
          %vm242 = vcmask 7168
          %243 = vst.msk [vmem:[#allocation2] sm:$0xff] %vm242, 0.0
        $region36: #{tpu_custom_call.1} parent=31 // pred_fallthru
          _
        %v244 = vld [vmem:[%s223] sm:$0xff]
        %v245 = vld [vmem:[%s1] sm:$0x1]
        %v247 = vperm.slane %v245, 0
        %v249 = vadd.f32 %v244, %v247
        %vm250 = vcmask 130048
        %v251 = vsel %vm250, %v249, -inf
        %252 = vmax.xlane.f32.xlu0 %v251
        %v253 = vpop.xlane.xlu0 %252
        %v254 = vsub.f32 %v249, %v253
        %v255 = vmul.f32 %v254, 1.442695
        %v256 = vpow.pop %v255
        %v257 = vsel %vm250, %v256, 0.0
        %258 = vadd.xlane.f32.xlu0 %v257
        %v259 = vpop.xlane.xlu0 %258
        %v260 = vlog2.pop %v259
        %v261 = vmul.f32 %v260, 0.6931472
        %v262 = vlaneseq
        %v263 = vand.u32 %v262, 127
        %v264 = vld [vmem:[%s233] sm:$0xff]
        %265 = vset.pattern.permute.xlu0 0
        %266 = vperm.xlu0 %265, %v264
        %v267 = vpop.permute.xlu0 %266
        %vm268 = vcmp.eq.s32.totalorder %v263, %v267
        %v269 = vsel %vm268, 0.9, 0.006666667
        %v270 = vmul.f32 %v269, %v254
        %v271 = vsel %vm250, %v270, 0.0
        %272 = vadd.xlane.f32.xlu0 %v271
        %v273 = vpop.xlane.xlu0 %272
        %v274 = vsub.f32 %v261, %v273
        %v275 = vlaneseq
        %v276 = vshrl.u32 %v275, 7
        %s277 = smul.u32 %s237, 8
        %v278 = vstv %s277
        %v279 = vadd.s32 %v276, %v278
        %v280 = vld [vmem:[#allocation2] sm:$0xff]
        %vm281 = vcmp.lt.s32.totalorder %v279, 12
        %v282 = vsel %vm281, %v274, 0.0
        %v283 = vadd.f32 %v280, %v282
        %vm284 = vcmask 7168
        %285 = vst.msk [vmem:[#allocation2] sm:$0xff] %vm284, %v283
        // Predicated region
        $region37: #{tpu_custom_call.1} parent=31 // pred_check
          %p286 = pneg %p238
        $region38: #{tpu_custom_call.1} parent=31 // pred_check_branch
          %288 = sbr.rel (%p286) target = $region40
        $region39: #{tpu_custom_call.1} parent=31 // pred_region
          %v289 = vld [vmem:[#allocation2] sm:$0xff]
          %v290 = vsel %vm284, %v289, 0.0
          %291 = vadd.xlane.f32.xlu0 %v290
          %v292 = vpop.xlane.xlu0 %291
          %v293 = vrot.slane %v292, 4
          %v294 = vadd.f32 %v292, %v293
          %v295 = vrot.slane %v294, 2
          %v296 = vadd.f32 %v294, %v295
          %v297 = vrot.slane %v296, 1
          %v298 = vadd.f32 %v296, %v297
          %s299 = vtos %v298
          %s300 = smul.f32 %s299, 0.083333336
          %v301 = vstv %s300
          %302 = vst [vmem:[%s216] sm:$0xff] %v301
        $region40: #{tpu_custom_call.1} parent=31 // pred_fallthru
          _
        %s303 = sand.u32 %s122, 1
        %s304 = scalar_lea.sflag [#allocation4], %s303
        %s305 = sand.u32 %s122, 1
        %s306 = smul.addr %s305, 8
        %s307 = scalar_lea.vmem [#allocation3], %s306
        // Predicated region
        $region41: #{tpu_custom_call.1} parent=31 // pred_check
          %p308 = pneg %p132
        $region42: #{tpu_custom_call.1} parent=31 // pred_check_branch
          %310 = sbr.rel (%p308) target = $region44
        $region43: #{tpu_custom_call.1} parent=31 // pred_region
          %312 = vsyncadd %s304, 0
          %s313 = smul.addr %s21, 8
          %s314 = scalar_lea.hbm %s3, %s313
          %s316 = sshll.u32 %s307, 4
          %s317 = int_to_ptr.vmem [resolvable:$true] %s316
          %s318 = sshll.u32 %s314, 4
          %s319 = int_to_ptr.hbm [resolvable:$true] %s318
          %321 = dma.vmem_to_hbm [thread:$0]  %s317, 128, %s319, %s304
        $region44: #{tpu_custom_call.1} parent=31 // pred_fallthru
          _
      $region32: #{tpu_custom_call.1} parent=5 // pred_fallthru
        _
      %p322 = scmp.le.s32.totalorder 2, %s12
      // Predicated region
      $region45: #{tpu_custom_call.1} parent=5 // pred_check
        %p323 = pneg %p322
      $region46: #{tpu_custom_call.1} parent=5 // pred_check_branch
        %325 = sbr.rel (%p323) target = $region48
      $region47: #{tpu_custom_call.1} parent=5 // pred_region
        %s326 = ssub.s32 %s12, 2
        // Predicated region
        $region49: #{tpu_custom_call.1} parent=47 // pred_check
          %p327 = pneg %p138
        $region50: #{tpu_custom_call.1} parent=47 // pred_check_branch
          %329 = sbr.rel (%p327) target = $region52
        $region51: #{tpu_custom_call.1} parent=47 // pred_region
          %s330 = sand.u32 %s123, 1
          %s331 = scalar_lea.sflag [#allocation4], %s330
          %s332 = sand.u32 %s123, 1
          %s333 = smul.addr %s332, 8
          %s334 = scalar_lea.vmem [#allocation3], %s333
          %336 = dma.done %s331, 128
        $region52: #{tpu_custom_call.1} parent=47 // pred_fallthru
          _
      $region48: #{tpu_custom_call.1} parent=5 // pred_fallthru
        _
    $region6: #{tpu_custom_call.1} parent=1 // loop_footer
      %s16 = sadd.s32 1, %s12
    $region7: #{tpu_custom_call.1} parent=1 // loop_footer_branch
      %11 = sbr.rel target = $region3
    $region8: #{tpu_custom_call.1} parent=1 // loop_exit
      _
    %337 = vsyncpa [#allocation4], 1
    %s338 = scalar_lea.sflag [#allocation4], 1
    %339 = vsyncpa %s338, 1

</llo_original>
